<compile_context>
chip_gen: v6e
topology: v6e:2x2x1
jax: 0.10.0
libtpu: 0.0.40
codegen_flags: <defaults>
</compile_context>

<pallas_src>
import functools

import jax
import jax.numpy as jnp
from jax.experimental import pallas as pl
from jax.experimental.pallas import tpu as pltpu

HIDDEN = 100
HIDDEN_PAD = 128          # lane-aligned hidden width
N_HIDDEN_LAYERS = 4
BN_EPS = 1e-5

# Conservative per-kernel VMEM budget: fits v5e's 16 MiB default scoped limit
# (the tightest of v5e/v6e/v7x defaults) without touching vmem_limit_bytes.
VMEM_BUDGET_BYTES = 10 * 1024 * 1024


def dnn0_kernel(x_ref, *refs):
    """One batch tile: x (TB, D) -> out (1, TB) (batch on the lane axis).

    refs = [w1, b1, w2, b2, w3, b3, w4, b4, w_out_row, b_out, out_ref].
    Weights already have eval-mode BatchNorm folded in, are zero-padded to
    HIDDEN_PAD lanes, and are in the matmul dtype (bf16 recommended).
    Biases stay f32 (added to the f32 MXU accumulator).  b_out lives in SMEM.
    """
    out_ref = refs[-1]
    p = refs[:-1]
    act_dtype = p[0].dtype          # matmul dtype (bf16 or f32)

    h = x_ref[...]                  # (TB, D), already in the matmul dtype
    for layer in range(N_HIDDEN_LAYERS):
        w_ref, b_ref = p[2 * layer], p[2 * layer + 1]
        # Linear + folded BatchNorm (MXU, f32 accumulation), bias + ReLU (VPU).
        # Dropout is identity in eval mode.
        z = jnp.dot(h, w_ref[...], preferred_element_type=jnp.float32) + b_ref[...]
        h = jnp.maximum(z, 0.0).astype(act_dtype)

    w_out_ref, b_out_ref = p[-2], p[-1]
    # Final Linear(HIDDEN_PAD -> 1): contract the feature axis of both operands
    # so the result is (1, TB) with batch on lanes -> lane-dense output store.
    z = jnp.einsum("ok,bk->ob", w_out_ref[...], h,
                   preferred_element_type=jnp.float32)
    out_ref[...] = jax.nn.sigmoid(z + b_out_ref[0, 0])


def _round_up(n, m):
    return ((n + m - 1) // m) * m


def _pick_block_batch(B, D, x_itemsize, weight_bytes, block_batch):
    """Choose the batch-tile size TB (static, from shapes only)."""
    # Small-batch clamp: never pad the batch beyond the next multiple of 128.
    tb = max(128, min(_round_up(block_batch, 128), _round_up(B, 128)))
    # v7x megacore: keep >= 2 grid steps when the batch allows it so the
    # ("parallel",) axis can be sharded across both TensorCores.
    if B > 128 and pl.cdiv(B, tb) < 2:
        tb = max(128, _round_up(pl.cdiv(B, 2), 128))

    # VMEM guardrail: x tile is double-buffered, weights assumed double-buffered
    # (worst case) and resident, output row double-buffered (f32).
    def footprint(t):
        return 2 * t * D * x_itemsize + 2 * weight_bytes + 2 * t * 4

    while tb > 128 and footprint(tb) > VMEM_BUDGET_BYTES:
        tb -= 128
    # TODO(synk): for very large BOW vocabularies (D >> 10k) add a K-reduction
    # grid axis over D for layer 1 (VMEM f32 accumulator + pl.when init) instead
    # of holding w1 fully resident.
    return tb


@functools.partial(jax.jit, static_argnames=("block_batch",))
def dnn0_forward(x, folded_params, *, block_batch=512):
    """Run the fused DNN_0 forward pass; returns (B, 1) probabilities (f32)."""
    B, D = x.shape
    matmul_dtype = folded_params[0].dtype
    x = x.astype(matmul_dtype)          # bf16 recommended: native MXU rate

    weight_bytes = sum(int(p.size) * p.dtype.itemsize for p in folded_params)
    TB = _pick_block_batch(B, D, x.dtype.itemsize, weight_bytes, block_batch)
    G = pl.cdiv(B, TB)
    Bp = G * TB
    if Bp != B:
        # Pad the batch so every grid step gets a full (TB, D) tile; padded rows
        # produce garbage logits that are sliced off below.
        x = jnp.pad(x, ((0, Bp - B), (0, 0)))

    in_specs = [pl.BlockSpec((TB, D), lambda i: (i, 0))]          # x: batch-tiled
    for prm in folded_params[:-1]:
        # Parameters are tiny (<= 128x128) -> keep each fully resident in VMEM
        # (same block index every grid step, so no per-step re-DMA).
        in_specs.append(pl.BlockSpec(prm.shape, lambda i: (0, 0)))
    # b_out is a single scalar: put it in SMEM (a (1,1) VMEM block would be
    # padded to a full (8,128) tile and cost a pointless DMA).
    in_specs.append(pl.BlockSpec(memory_space=pltpu.MemorySpace.SMEM))

    out = pl.pallas_call(
        dnn0_kernel,
        out_shape=jax.ShapeDtypeStruct((1, Bp), jnp.float32),
        grid=(G,),
        in_specs=in_specs,
        # Lane-dense output: batch lives on the lane axis, each grid step writes
        # a disjoint (1, TB) lane block of the single output row.
        out_specs=pl.BlockSpec((1, TB), lambda i: (0, i)),
        compiler_params=pltpu.CompilerParams(
            dimension_semantics=("parallel",)),   # megacore batch sharding on v7x
    )(x, *folded_params)

    return out[0, :B].reshape(B, 1)


def fold_and_pad_params(raw_params, *, matmul_dtype=jnp.bfloat16):
    """Fold eval-mode BatchNorm into each Linear and zero-pad widths to 128 lanes.

    raw_params = [w, b, gamma, beta, mean, var] * 4 + [w_out, b_out]  (width 100)
    returns    = [w1', b1', ..., w4', b4', w_out_row', b_out]          (width 128)
    Weights are cast to matmul_dtype (bf16 = native MXU dtype); biases stay f32.
    """
    folded = []
    idx = 0
    for layer in range(N_HIDDEN_LAYERS):
        w, b, gamma, beta, mean, var = raw_params[idx:idx + 6]
        idx += 6
        scale = gamma * jax.lax.rsqrt(var + BN_EPS)                 # (1, 100)
        w_f = w * scale                                             # (in, 100)
        b_f = (b - mean) * scale + beta                             # (1, 100)
        # Pad output features 100 -> 128 with zeros (ReLU keeps those lanes at 0).
        w_f = jnp.pad(w_f, ((0, 0), (0, HIDDEN_PAD - HIDDEN)))
        b_f = jnp.pad(b_f, ((0, 0), (0, HIDDEN_PAD - HIDDEN)))
        if layer > 0:
            # Pad input features 100 -> 128 (those activations are exactly 0).
            w_f = jnp.pad(w_f, ((0, HIDDEN_PAD - HIDDEN), (0, 0)))
        folded += [w_f.astype(matmul_dtype), b_f.astype(jnp.float32)]

    w_out, b_out = raw_params[idx], raw_params[idx + 1]             # (100, 1), (1, 1)
    w_out_row = jnp.pad(w_out.T, ((0, 0), (0, HIDDEN_PAD - HIDDEN)))  # (1, 128)
    folded += [w_out_row.astype(matmul_dtype), b_out.astype(jnp.float32)]
    return folded


def init_params(key, dimension):
    """Deterministic synthetic parameters matching DNN_0's shapes (raw, unfolded)."""
    flat = []
    in_dim = dimension
    for _ in range(N_HIDDEN_LAYERS):
        key, kw, kb, kg, kbe, km, kv = jax.random.split(key, 7)
        scale = 1.0 / jnp.sqrt(jnp.float32(in_dim))
        w = jax.random.uniform(kw, (in_dim, HIDDEN), jnp.float32, -scale, scale)
        b = jax.random.uniform(kb, (1, HIDDEN), jnp.float32, -scale, scale)
        gamma = 1.0 + 0.1 * jax.random.normal(kg, (1, HIDDEN), jnp.float32)
        beta = 0.1 * jax.random.normal(kbe, (1, HIDDEN), jnp.float32)
        mean = 0.1 * jax.random.normal(km, (1, HIDDEN), jnp.float32)
        var = 0.5 + jnp.abs(jax.random.normal(kv, (1, HIDDEN), jnp.float32))
        flat += [w, b, gamma, beta, mean, var]
        in_dim = HIDDEN
    key, kw, kb = jax.random.split(key, 3)
    scale = 1.0 / jnp.sqrt(jnp.float32(HIDDEN))
    w_out = jax.random.uniform(kw, (HIDDEN, 1), jnp.float32, -scale, scale)
    b_out = jax.random.uniform(kb, (1, 1), jnp.float32, -scale, scale)
    flat += [w_out, b_out]
    return flat


def dnn0_reference(x, raw_params):
    """Pure-JAX reference using the ORIGINAL (unfolded, unpadded) parameters."""
    h = x.astype(jnp.float32)
    idx = 0
    for _ in range(N_HIDDEN_LAYERS):
        w, b, gamma, beta, mean, var = raw_params[idx:idx + 6]
        idx += 6
        h = h @ w + b
        h = (h - mean) / jnp.sqrt(var + BN_EPS) * gamma + beta
        h = jnp.maximum(h, 0.0)
    w_out, b_out = raw_params[idx], raw_params[idx + 1]
    return jax.nn.sigmoid(h @ w_out + b_out)


if __name__ == "__main__":
    BATCH = 8
    DIMENSION = 32  # bag-of-words feature dimension (small synthetic size)

    key = jax.random.PRNGKey(0)
    key, kx = jax.random.split(key)
    x = jax.random.normal(kx, (BATCH, DIMENSION), jnp.float32)
    raw_params = init_params(key, DIMENSION)

    ref = dnn0_reference(x, raw_params)

    # 1) f32 path: tight correctness check of the folding / padding / layout logic.
    params_f32 = fold_and_pad_params(raw_params, matmul_dtype=jnp.float32)
    out_f32 = jax.block_until_ready(dnn0_forward(x, params_f32))
    assert out_f32.shape == (BATCH, 1), out_f32.shape
    assert jnp.allclose(out_f32, ref, atol=1e-4, rtol=1e-4), (out_f32, ref)

    # 2) bf16 path (recommended deployment config: native MXU dtype, f32 accumulation).
    params_bf16 = fold_and_pad_params(raw_params, matmul_dtype=jnp.bfloat16)
    out_bf16 = jax.block_until_ready(dnn0_forward(x, params_bf16))
    assert out_bf16.shape == (BATCH, 1), out_bf16.shape
    assert jnp.allclose(out_bf16, ref, atol=2e-2, rtol=2e-2), (out_bf16, ref)

    print("KERNEL_OK")
</pallas_src>

<mosaic_0001>
module attributes {stable_mosaic.version = 11 : i64} {
  func.func @dnn0_kernel(%arg0: i32, %arg1: memref<128x32xf32, #tpu.memory_space<vmem>>, %arg2: memref<32x128xf32, #tpu.memory_space<vmem>>, %arg3: memref<1x128xf32, #tpu.memory_space<vmem>>, %arg4: memref<128x128xf32, #tpu.memory_space<vmem>>, %arg5: memref<1x128xf32, #tpu.memory_space<vmem>>, %arg6: memref<128x128xf32, #tpu.memory_space<vmem>>, %arg7: memref<1x128xf32, #tpu.memory_space<vmem>>, %arg8: memref<128x128xf32, #tpu.memory_space<vmem>>, %arg9: memref<1x128xf32, #tpu.memory_space<vmem>>, %arg10: memref<1x128xf32, #tpu.memory_space<vmem>>, %arg11: memref<1x1xf32, #tpu.memory_space<smem>>, %arg12: memref<1x128xf32, #tpu.memory_space<vmem>>) attributes {dimension_semantics = [#tpu.dimension_semantics<parallel>], iteration_bounds = array<i64: 1>, scalar_prefetch = 0 : i64, scratch_operands = 0 : i64, tpu.core_type = #tpu.core_type<tc>, window_params = [{transform_indices = @transform_0, window_bounds = array<i64: 128, 32>}, {pipeline_mode = #tpu.pipeline_mode<synchronous>, transform_indices = @transform_1, window_bounds = array<i64: 32, 128>}, {pipeline_mode = #tpu.pipeline_mode<synchronous>, transform_indices = @transform_2, window_bounds = array<i64: 1, 128>}, {pipeline_mode = #tpu.pipeline_mode<synchronous>, transform_indices = @transform_3, window_bounds = array<i64: 128, 128>}, {pipeline_mode = #tpu.pipeline_mode<synchronous>, transform_indices = @transform_4, window_bounds = array<i64: 1, 128>}, {pipeline_mode = #tpu.pipeline_mode<synchronous>, transform_indices = @transform_5, window_bounds = array<i64: 128, 128>}, {pipeline_mode = #tpu.pipeline_mode<synchronous>, transform_indices = @transform_6, window_bounds = array<i64: 1, 128>}, {pipeline_mode = #tpu.pipeline_mode<synchronous>, transform_indices = @transform_7, window_bounds = array<i64: 128, 128>}, {pipeline_mode = #tpu.pipeline_mode<synchronous>, transform_indices = @transform_8, window_bounds = array<i64: 1, 128>}, {pipeline_mode = #tpu.pipeline_mode<synchronous>, transform_indices = @transform_9, window_bounds = array<i64: 1, 128>}, {transform_indices = @transform_10, window_bounds = array<i64: 1, 1>}, {transform_indices = @transform_11, window_bounds = array<i64: 1, 128>}]} {
    %c0 = arith.constant 0 : index
    %c0_0 = arith.constant 0 : index
    %0 = vector.load %arg1[%c0, %c0_0] : memref<128x32xf32, #tpu.memory_space<vmem>>, vector<128x32xf32>
    %c0_1 = arith.constant 0 : index
    %c0_2 = arith.constant 0 : index
    %1 = vector.load %arg2[%c0_1, %c0_2] : memref<32x128xf32, #tpu.memory_space<vmem>>, vector<32x128xf32>
    %cst = arith.constant dense<0.000000e+00> : vector<128x128xf32>
    %2 = tpu.matmul %0, %1, %cst {dimension_numbers = #tpu.dot_dimension_numbers<[1], [0], [0], [1], [0, 0, 1, 1], [], []>} : vector<128x32xf32>, vector<32x128xf32>, vector<128x128xf32> -> vector<128x128xf32>
    %c0_3 = arith.constant 0 : index
    %c0_4 = arith.constant 0 : index
    %3 = vector.load %arg3[%c0_3, %c0_4] : memref<1x128xf32, #tpu.memory_space<vmem>>, vector<1x128xf32>
    %4 = vector.broadcast %3 : vector<1x128xf32> to vector<128x128xf32>
    %5 = arith.addf %2, %4 : vector<128x128xf32>
    %cst_5 = arith.constant 0.000000e+00 : f32
    %6 = vector.broadcast %cst_5 : f32 to vector<128x128xf32>
    %7 = arith.maximumf %5, %6 : vector<128x128xf32>
    %c0_6 = arith.constant 0 : index
    %c0_7 = arith.constant 0 : index
    %8 = vector.load %arg4[%c0_6, %c0_7] : memref<128x128xf32, #tpu.memory_space<vmem>>, vector<128x128xf32>
    %cst_8 = arith.constant dense<0.000000e+00> : vector<128x128xf32>
    %9 = tpu.matmul %7, %8, %cst_8 {dimension_numbers = #tpu.dot_dimension_numbers<[1], [0], [0], [1], [0, 0, 1, 1], [], []>} : vector<128x128xf32>, vector<128x128xf32>, vector<128x128xf32> -> vector<128x128xf32>
    %c0_9 = arith.constant 0 : index
    %c0_10 = arith.constant 0 : index
    %10 = vector.load %arg5[%c0_9, %c0_10] : memref<1x128xf32, #tpu.memory_space<vmem>>, vector<1x128xf32>
    %11 = vector.broadcast %10 : vector<1x128xf32> to vector<128x128xf32>
    %12 = arith.addf %9, %11 : vector<128x128xf32>
    %cst_11 = arith.constant 0.000000e+00 : f32
    %13 = vector.broadcast %cst_11 : f32 to vector<128x128xf32>
    %14 = arith.maximumf %12, %13 : vector<128x128xf32>
    %c0_12 = arith.constant 0 : index
    %c0_13 = arith.constant 0 : index
    %15 = vector.load %arg6[%c0_12, %c0_13] : memref<128x128xf32, #tpu.memory_space<vmem>>, vector<128x128xf32>
    %cst_14 = arith.constant dense<0.000000e+00> : vector<128x128xf32>
    %16 = tpu.matmul %14, %15, %cst_14 {dimension_numbers = #tpu.dot_dimension_numbers<[1], [0], [0], [1], [0, 0, 1, 1], [], []>} : vector<128x128xf32>, vector<128x128xf32>, vector<128x128xf32> -> vector<128x128xf32>
    %c0_15 = arith.constant 0 : index
    %c0_16 = arith.constant 0 : index
    %17 = vector.load %arg7[%c0_15, %c0_16] : memref<1x128xf32, #tpu.memory_space<vmem>>, vector<1x128xf32>
    %18 = vector.broadcast %17 : vector<1x128xf32> to vector<128x128xf32>
    %19 = arith.addf %16, %18 : vector<128x128xf32>
    %cst_17 = arith.constant 0.000000e+00 : f32
    %20 = vector.broadcast %cst_17 : f32 to vector<128x128xf32>
    %21 = arith.maximumf %19, %20 : vector<128x128xf32>
    %c0_18 = arith.constant 0 : index
    %c0_19 = arith.constant 0 : index
    %22 = vector.load %arg8[%c0_18, %c0_19] : memref<128x128xf32, #tpu.memory_space<vmem>>, vector<128x128xf32>
    %cst_20 = arith.constant dense<0.000000e+00> : vector<128x128xf32>
    %23 = tpu.matmul %21, %22, %cst_20 {dimension_numbers = #tpu.dot_dimension_numbers<[1], [0], [0], [1], [0, 0, 1, 1], [], []>} : vector<128x128xf32>, vector<128x128xf32>, vector<128x128xf32> -> vector<128x128xf32>
    %c0_21 = arith.constant 0 : index
    %c0_22 = arith.constant 0 : index
    %24 = vector.load %arg9[%c0_21, %c0_22] : memref<1x128xf32, #tpu.memory_space<vmem>>, vector<1x128xf32>
    %25 = vector.broadcast %24 : vector<1x128xf32> to vector<128x128xf32>
    %26 = arith.addf %23, %25 : vector<128x128xf32>
    %cst_23 = arith.constant 0.000000e+00 : f32
    %27 = vector.broadcast %cst_23 : f32 to vector<128x128xf32>
    %28 = arith.maximumf %26, %27 : vector<128x128xf32>
    %c0_24 = arith.constant 0 : index
    %c0_25 = arith.constant 0 : index
    %29 = vector.load %arg10[%c0_24, %c0_25] : memref<1x128xf32, #tpu.memory_space<vmem>>, vector<1x128xf32>
    "tpu.trace_start"() <{level = 10 : i32, message = "ok,bk->ob"}> : () -> ()
    %cst_26 = arith.constant dense<0.000000e+00> : vector<1x128xf32>
    %30 = tpu.matmul %29, %28, %cst_26 {dimension_numbers = #tpu.dot_dimension_numbers<[1], [1], [0], [0], [0, 0, 1, 0], [], []>} : vector<1x128xf32>, vector<128x128xf32>, vector<1x128xf32> -> vector<1x128xf32>
    "tpu.trace_stop"() : () -> ()
    %c0_27 = arith.constant 0 : index
    %c0_28 = arith.constant 0 : index
    %31 = memref.load %arg11[%c0_27, %c0_28] : memref<1x1xf32, #tpu.memory_space<smem>>
    %32 = vector.broadcast %31 : f32 to vector<1x128xf32>
    %33 = arith.addf %30, %32 : vector<1x128xf32>
    %34 = arith.negf %33 : vector<1x128xf32>
    %35 = math.exp %34 : vector<1x128xf32>
    %cst_29 = arith.constant 1.000000e+00 : f32
    %36 = vector.broadcast %cst_29 : f32 to vector<1x128xf32>
    %37 = arith.addf %36, %35 : vector<1x128xf32>
    %38 = arith.divf %36, %37 : vector<1x128xf32>
    %c0_30 = arith.constant 0 : index
    %c0_31 = arith.constant 0 : index
    %39 = vector.load %arg12[%c0_30, %c0_31] : memref<1x128xf32, #tpu.memory_space<vmem>>, vector<1x128xf32>
    tpu.vector_store %arg12[%c0_30, %c0_31], %38 {strides = array<i32>} : memref<1x128xf32, #tpu.memory_space<vmem>>, vector<1x128xf32>,
    return
  }
  func.func @transform_0(%arg0: i32) -> (i32, i32) {
    %c0_i32 = arith.constant 0 : i32
    %c0_i32_0 = arith.constant 0 : i32
    return %arg0, %c0_i32 : i32, i32
  }
  func.func @transform_1(%arg0: i32) -> (i32, i32) {
    %c0_i32 = arith.constant 0 : i32
    %c0_i32_0 = arith.constant 0 : i32
    %c0_i32_1 = arith.constant 0 : i32
    return %c0_i32, %c0_i32_0 : i32, i32
  }
  func.func @transform_2(%arg0: i32) -> (i32, i32) {
    %c0_i32 = arith.constant 0 : i32
    %c0_i32_0 = arith.constant 0 : i32
    %c0_i32_1 = arith.constant 0 : i32
    return %c0_i32, %c0_i32_0 : i32, i32
  }
  func.func @transform_3(%arg0: i32) -> (i32, i32) {
    %c0_i32 = arith.constant 0 : i32
    %c0_i32_0 = arith.constant 0 : i32
    %c0_i32_1 = arith.constant 0 : i32
    return %c0_i32, %c0_i32_0 : i32, i32
  }
  func.func @transform_4(%arg0: i32) -> (i32, i32) {
    %c0_i32 = arith.constant 0 : i32
    %c0_i32_0 = arith.constant 0 : i32
    %c0_i32_1 = arith.constant 0 : i32
    return %c0_i32, %c0_i32_0 : i32, i32
  }
  func.func @transform_5(%arg0: i32) -> (i32, i32) {
    %c0_i32 = arith.constant 0 : i32
    %c0_i32_0 = arith.constant 0 : i32
    %c0_i32_1 = arith.constant 0 : i32
    return %c0_i32, %c0_i32_0 : i32, i32
  }
  func.func @transform_6(%arg0: i32) -> (i32, i32) {
    %c0_i32 = arith.constant 0 : i32
    %c0_i32_0 = arith.constant 0 : i32
    %c0_i32_1 = arith.constant 0 : i32
    return %c0_i32, %c0_i32_0 : i32, i32
  }
  func.func @transform_7(%arg0: i32) -> (i32, i32) {
    %c0_i32 = arith.constant 0 : i32
    %c0_i32_0 = arith.constant 0 : i32
    %c0_i32_1 = arith.constant 0 : i32
    return %c0_i32, %c0_i32_0 : i32, i32
  }
  func.func @transform_8(%arg0: i32) -> (i32, i32) {
    %c0_i32 = arith.constant 0 : i32
    %c0_i32_0 = arith.constant 0 : i32
    %c0_i32_1 = arith.constant 0 : i32
    return %c0_i32, %c0_i32_0 : i32, i32
  }
  func.func @transform_9(%arg0: i32) -> (i32, i32) {
    %c0_i32 = arith.constant 0 : i32
    %c0_i32_0 = arith.constant 0 : i32
    %c0_i32_1 = arith.constant 0 : i32
    return %c0_i32, %c0_i32_0 : i32, i32
  }
  func.func @transform_10(%arg0: i32) -> (i32, i32) {
    %c0_i32 = arith.constant 0 : i32
    %c0_i32_0 = arith.constant 0 : i32
    %c0_i32_1 = arith.constant 0 : i32
    return %c0_i32, %c0_i32_0 : i32, i32
  }
  func.func @transform_11(%arg0: i32) -> (i32, i32) {
    %c0_i32 = arith.constant 0 : i32
    %c0_i32_0 = arith.constant 0 : i32
    return %c0_i32, %arg0 : i32, i32
  }
}

</mosaic_0001>

<llo_original>
// kernel: dnn0_forward.1
$region0: #{dnn0_forward.1}
  #allocation0 [shape = 'u32[]', space=smem, size = 0x4, offset = 0x4, fixed_abs, tag = 'smem constant byte address 0x4 - core index']
  #allocation1 [shape = 'u32[144,128]{1,0:T(1,128)}', space=vmem, size = 0x12000, scoped, tag = 'internal scratch']
  #allocation2 [shape = 'f32[1,1]{1,0:T(1,128)S(6)}', space=smem, size = 0x200, scoped, tag = 'scoped memory for dnn0_forward.1']
  %s0 = inlined_call_operand.vmem [shape: f32[128,32], index: 0, kind: input, shape index: {}]
  %s1 = inlined_call_operand.hbm [shape: f32[32,128], index: 1, kind: input, shape index: {}]
  %s2 = inlined_call_operand.vmem [shape: f32[1,128], index: 2, kind: input, shape index: {}]
  %s3 = inlined_call_operand.vmem [shape: f32[128,128], index: 3, kind: input, shape index: {}]
  %s4 = inlined_call_operand.vmem [shape: f32[1,128], index: 4, kind: input, shape index: {}]
  %s5 = inlined_call_operand.hbm [shape: f32[128,128], index: 5, kind: input, shape index: {}]
  %s6 = inlined_call_operand.vmem [shape: f32[1,128], index: 6, kind: input, shape index: {}]
  %s7 = inlined_call_operand.hbm [shape: f32[128,128], index: 7, kind: input, shape index: {}]
  %s8 = inlined_call_operand.vmem [shape: f32[1,128], index: 8, kind: input, shape index: {}]
  %s9 = inlined_call_operand.vmem [shape: f32[1,128], index: 9, kind: input, shape index: {}]
  %s10 = inlined_call_operand.<no memory space> [shape: f32[1,1], index: 10, kind: input, shape index: {}]
  %s11 = inlined_call_operand.vmem [shape: f32[1,128], index: 11, kind: output, shape index: {}]
  %s12 = sld [smem:[#allocation0]]
  $region66: #{dnn0_forward.1} parent=0
    _
  %s14 = ssub.s32 1, %s12
  %s15 = scalar_select 0, %s14, %s12
  %16 = sst [smem:[#allocation2]] %s10
  $region1: #{dnn0_forward.1} parent=0
    #allocation3 [shape = 'u8[16384]{0}', space=vmem, size = 0x4000, scoped, tag = 'input window, operand 1, single buffered']
    #allocation4 [shape = 's32[1]{0}', space=sflag, size = 0x4, scoped, tag = 'scoped memory for dnn0_forward.1']
    #allocation5 [shape = 'u8[65536]{0}', space=vmem, size = 0x10000, scoped, tag = 'input window, operand 5, single buffered']
    #allocation6 [shape = 's32[1]{0}', space=sflag, size = 0x4, scoped, tag = 'scoped memory for dnn0_forward.1']
    #allocation7 [shape = 'u8[65536]{0}', space=vmem, size = 0x10000, scoped, tag = 'input window, operand 7, single buffered']
    %17 = vsyncpa [#allocation4], 0
    %18 = vsyncpa [#allocation6], 0
    // Predicated region
    $region2: #{dnn0_forward.1} parent=1 // pred_check
      _
    $region3: #{dnn0_forward.1} parent=1 // pred_check_branch
      %20 = sbr.rel (0) target = $region5
    $region4: #{dnn0_forward.1} parent=1 // pred_region
      _
    $region5: #{dnn0_forward.1} parent=1 // pred_fallthru
      _
    // Predicated region
    $region6: #{dnn0_forward.1} parent=1 // pred_check
      _
    $region7: #{dnn0_forward.1} parent=1 // pred_check_branch
      %22 = sbr.rel (0) target = $region9
    $region8: #{dnn0_forward.1} parent=1 // pred_region
      %s24 = ssub.s32 512, 512
      %25 = vsyncadd [#allocation4], %s24
      %s26 = sshll.u32 [#allocation3], 4
      %s27 = int_to_ptr.vmem [resolvable:$true] %s26
      %32 = dma.hbm_to_vmem [thread:$0]  %s1, 512, %s27, [#allocation4], 128, 128, 8
    $region9: #{dnn0_forward.1} parent=1 // pred_fallthru
      _
    // Predicated region
    $region10: #{dnn0_forward.1} parent=1 // pred_check
      _
    $region11: #{dnn0_forward.1} parent=1 // pred_check_branch
      %34 = sbr.rel (0) target = $region13
    $region12: #{dnn0_forward.1} parent=1 // pred_region
      _
    $region13: #{dnn0_forward.1} parent=1 // pred_fallthru
      _
    // Predicated region
    $region14: #{dnn0_forward.1} parent=1 // pred_check
      _
    $region15: #{dnn0_forward.1} parent=1 // pred_check_branch
      %36 = sbr.rel (0) target = $region17
    $region16: #{dnn0_forward.1} parent=1 // pred_region
      _
    $region17: #{dnn0_forward.1} parent=1 // pred_fallthru
      _
    // Predicated region
    $region18: #{dnn0_forward.1} parent=1 // pred_check
      _
    $region19: #{dnn0_forward.1} parent=1 // pred_check_branch
      %38 = sbr.rel (0) target = $region21
    $region20: #{dnn0_forward.1} parent=1 // pred_region
      _
    $region21: #{dnn0_forward.1} parent=1 // pred_fallthru
      _
    // Predicated region
    $region22: #{dnn0_forward.1} parent=1 // pred_check
      _
    $region23: #{dnn0_forward.1} parent=1 // pred_check_branch
      %40 = sbr.rel (0) target = $region25
    $region24: #{dnn0_forward.1} parent=1 // pred_region
      %s42 = ssub.s32 2048, 2048
      %43 = vsyncadd [#allocation6], %s42
      %s44 = sshll.u32 [#allocation5], 4
      %s45 = int_to_ptr.vmem [resolvable:$true] %s44
      %50 = dma.hbm_to_vmem [thread:$0]  %s5, 2048, %s45, [#allocation6], 128, 128, 8
    $region25: #{dnn0_forward.1} parent=1 // pred_fallthru
      _
    // Predicated region
    $region26: #{dnn0_forward.1} parent=1 // pred_check
      _
    $region27: #{dnn0_forward.1} parent=1 // pred_check_branch
      %52 = sbr.rel (0) target = $region29
    $region28: #{dnn0_forward.1} parent=1 // pred_region
      _
    $region29: #{dnn0_forward.1} parent=1 // pred_fallthru
      _
    // Predicated region
    $region30: #{dnn0_forward.1} parent=1 // pred_check
      _
    $region31: #{dnn0_forward.1} parent=1 // pred_check_branch
      %54 = sbr.rel (0) target = $region33
    $region32: #{dnn0_forward.1} parent=1 // pred_region
      %s56 = ssub.s32 2048, 2048
      %57 = vsyncadd [#allocation6], %s56
      %s58 = sshll.u32 [#allocation7], 4
      %s59 = int_to_ptr.vmem [resolvable:$true] %s58
      %64 = dma.hbm_to_vmem [thread:$0]  %s7, 2048, %s59, [#allocation6], 128, 128, 8
    $region33: #{dnn0_forward.1} parent=1 // pred_fallthru
      _
    // Predicated region
    $region34: #{dnn0_forward.1} parent=1 // pred_check
      _
    $region35: #{dnn0_forward.1} parent=1 // pred_check_branch
      %66 = sbr.rel (0) target = $region37
    $region36: #{dnn0_forward.1} parent=1 // pred_region
      _
    $region37: #{dnn0_forward.1} parent=1 // pred_fallthru
      _
    // Predicated region
    $region38: #{dnn0_forward.1} parent=1 // pred_check
      _
    $region39: #{dnn0_forward.1} parent=1 // pred_check_branch
      %68 = sbr.rel (0) target = $region41
    $region40: #{dnn0_forward.1} parent=1 // pred_region
      _
    $region41: #{dnn0_forward.1} parent=1 // pred_fallthru
      _
    // Predicated region
    $region42: #{dnn0_forward.1} parent=1 // pred_check
      _
    $region43: #{dnn0_forward.1} parent=1 // pred_check_branch
      %70 = sbr.rel (0) target = $region45
    $region44: #{dnn0_forward.1} parent=1 // pred_region
      _
    $region45: #{dnn0_forward.1} parent=1 // pred_fallthru
      _
    // Predicated region
    $region46: #{dnn0_forward.1} parent=1 // pred_check
      _
    $region47: #{dnn0_forward.1} parent=1 // pred_check_branch
      %72 = sbr.rel (0) target = $region49
    $region48: #{dnn0_forward.1} parent=1 // pred_region
      %73 = dma.done [#allocation4], 512
    $region49: #{dnn0_forward.1} parent=1 // pred_fallthru
      _
    // Predicated region
    $region50: #{dnn0_forward.1} parent=1 // pred_check
      _
    $region51: #{dnn0_forward.1} parent=1 // pred_check_branch
      %75 = sbr.rel (0) target = $region53
    $region52: #{dnn0_forward.1} parent=1 // pred_region
      %76 = dma.done [#allocation6], 2048
    $region53: #{dnn0_forward.1} parent=1 // pred_fallthru
      _
    // Predicated region
    $region54: #{dnn0_forward.1} parent=1 // pred_check
      _
    $region55: #{dnn0_forward.1} parent=1 // pred_check_branch
      %78 = sbr.rel (0) target = $region57
    $region56: #{dnn0_forward.1} parent=1 // pred_region
      %79 = dma.done [#allocation6], 2048
    $region57: #{dnn0_forward.1} parent=1 // pred_fallthru
      _
    %v80 = vld [vmem:[%s0] sm:$0xff]
    %v81 = vld [vmem:[%s0 + $0x8] sm:$0xff]
    %v82 = vld [vmem:[%s0 + $0x10] sm:$0xff]
    %v83 = vld [vmem:[%s0 + $0x18] sm:$0xff]
    %v84 = vld [vmem:[%s0 + $0x20] sm:$0xff]
    %v85 = vld [vmem:[%s0 + $0x28] sm:$0xff]
    %v86 = vld [vmem:[%s0 + $0x30] sm:$0xff]
    %v87 = vld [vmem:[%s0 + $0x38] sm:$0xff]
    %v88 = vld [vmem:[%s0 + $0x40] sm:$0xff]
    %v89 = vld [vmem:[%s0 + $0x48] sm:$0xff]
    %v90 = vld [vmem:[%s0 + $0x50] sm:$0xff]
    %v91 = vld [vmem:[%s0 + $0x58] sm:$0xff]
    %v92 = vld [vmem:[%s0 + $0x60] sm:$0xff]
    %v93 = vld [vmem:[%s0 + $0x68] sm:$0xff]
    %v94 = vld [vmem:[%s0 + $0x70] sm:$0xff]
    %v95 = vld [vmem:[%s0 + $0x78] sm:$0xff]
    %v96 = vld [vmem:[#allocation3] sm:$0xff]
    %v97 = vld [vmem:[#allocation3 + $0x8] sm:$0xff]
    %v98 = vld [vmem:[#allocation3 + $0x10] sm:$0xff]
    %v99 = vld [vmem:[#allocation3 + $0x18] sm:$0xff]
    %v100 = vld [vmem:[%s2] sm:$0x1]
    %v102 = vlaneseq
    %v103 = vshrl.u32 %v102, 7
    %v104 = vsub.s32 0, %v103
    %v105 = vrot.slane %v100, %v104
    %vm107 = vcmask 261120
    %v109 = vsel %vm107, %v80, 0
    %v112 = vsel %vm107, %v81, 0
    %v115 = vsel %vm107, %v82, 0
    %v118 = vsel %vm107, %v83, 0
    %v121 = vsel %vm107, %v84, 0
    %v124 = vsel %vm107, %v85, 0
    %v127 = vsel %vm107, %v86, 0
    %v130 = vsel %vm107, %v87, 0
    %v133 = vsel %vm107, %v88, 0
    %v136 = vsel %vm107, %v89, 0
    %v139 = vsel %vm107, %v90, 0
    %v142 = vsel %vm107, %v91, 0
    %v145 = vsel %vm107, %v92, 0
    %v148 = vsel %vm107, %v93, 0
    %v151 = vsel %vm107, %v94, 0
    %v154 = vsel %vm107, %v95, 0
    %156 = vmatprep.subr.mxu0 0.0
    %157 = vmatpush1.msra.mxu0 0.0
    %158 = vmatprep.subr.mxu0 0.0
    %159 = vmatpush1.msra.mxu0 0.0
    %160 = vmatprep.subr.mxu0 0.0
    %161 = vmatpush1.msra.mxu0 0.0
    %162 = vmatprep.subr.mxu0 0.0
    %163 = vmatpush1.msra.mxu0 0.0
    %164 = vmatprep.subr.mxu0 0.0
    %165 = vmatpush1.msra.mxu0 0.0
    %166 = vmatprep.subr.mxu0 0.0
    %167 = vmatpush1.msra.mxu0 0.0
    %168 = vmatprep.subr.mxu0 0.0
    %169 = vmatpush1.msra.mxu0 0.0
    %170 = vmatprep.subr.mxu0 0.0
    %171 = vmatpush1.msra.mxu0 0.0
    %172 = vmatprep.subr.mxu0 0.0
    %173 = vmatpush1.msra.mxu0 0.0
    %174 = vmatprep.subr.mxu0 0.0
    %175 = vmatpush1.msra.mxu0 0.0
    %176 = vmatprep.subr.mxu0 0.0
    %177 = vmatpush1.msra.mxu0 0.0
    %178 = vmatprep.subr.mxu0 0.0
    %179 = vmatpush1.msra.mxu0 0.0
    %180 = vmatprep.subr.mxu0 0.0
    %181 = vmatpush1.msra.mxu0 %v99
    %182 = vmatprep.subr.mxu0 0.0
    %183 = vmatpush1.msra.mxu0 %v98
    %184 = vmatprep.subr.mxu0 0.0
    %185 = vmatpush1.msra.mxu0 %v97
    %186 = vmatprep.subr.mxu0 0.0
    %187 = vmatpush1.msra.mxu0 %v96
    %188 = vmatprep.subr.mxu0 0.0
    %189 = vmatpush2.msra.mxu0 0.0
    %190 = vmatprep.subr.mxu0 0.0
    %191 = vmatpush2.msra.mxu0 0.0
    %192 = vmatprep.subr.mxu0 0.0
    %193 = vmatpush2.msra.mxu0 0.0
    %194 = vmatprep.subr.mxu0 0.0
    %195 = vmatpush2.msra.mxu0 0.0
    %196 = vmatprep.subr.mxu0 0.0
    %197 = vmatpush2.msra.mxu0 0.0
    %198 = vmatprep.subr.mxu0 0.0
    %199 = vmatpush2.msra.mxu0 0.0
    %200 = vmatprep.subr.mxu0 0.0
    %201 = vmatpush2.msra.mxu0 0.0
    %202 = vmatprep.subr.mxu0 0.0
    %203 = vmatpush2.msra.mxu0 0.0
    %204 = vmatprep.subr.mxu0 0.0
    %205 = vmatpush2.msra.mxu0 0.0
    %206 = vmatprep.subr.mxu0 0.0
    %207 = vmatpush2.msra.mxu0 0.0
    %208 = vmatprep.subr.mxu0 0.0
    %209 = vmatpush2.msra.mxu0 0.0
    %210 = vmatprep.subr.mxu0 0.0
    %211 = vmatpush2.msra.mxu0 0.0
    %212 = vmatprep.subr.mxu0 0.0
    %213 = vmatpush2.msra.mxu0 0.0
    %214 = vmatprep.subr.mxu0 0.0
    %215 = vmatpush2.msra.mxu0 0.0
    %216 = vmatprep.subr.mxu0 0.0
    %217 = vmatpush2.msra.mxu0 0.0
    %218 = vmatprep.subr.mxu0 0.0
    %219 = vmatpush2.msra.mxu0 0.0
    %220 = vmatprep.mubr.f32.mxu0 0.0
    %221 = vmatmul.mubr.f32.gmra.mxu0 %v109
    %v222 = vpop.f32.mrf.mxu0
    %v223 = vadd.f32 %v105, %v222
    %v224 = vpop.f32.mrf.mxu0
    %225 = vmatprep.mubr.f32.mxu0 0.0
    %226 = vmatmul.mubr.f32.gmra.mxu0 %v112
    %v227 = vpop.f32.mrf.mxu0
    %v228 = vadd.f32 %v105, %v227
    %v229 = vpop.f32.mrf.mxu0
    %230 = vmatprep.mubr.f32.mxu0 0.0
    %231 = vmatmul.mubr.f32.gmra.mxu0 %v115
    %v232 = vpop.f32.mrf.mxu0
    %v233 = vadd.f32 %v105, %v232
    %v234 = vpop.f32.mrf.mxu0
    %235 = vmatprep.mubr.f32.mxu0 0.0
    %236 = vmatmul.mubr.f32.gmra.mxu0 %v118
    %v237 = vpop.f32.mrf.mxu0
    %v238 = vadd.f32 %v105, %v237
    %v239 = vpop.f32.mrf.mxu0
    %240 = vmatprep.mubr.f32.mxu0 0.0
    %241 = vmatmul.mubr.f32.gmra.mxu0 %v121
    %v242 = vpop.f32.mrf.mxu0
    %v243 = vadd.f32 %v105, %v242
    %v244 = vpop.f32.mrf.mxu0
    %245 = vmatprep.mubr.f32.mxu0 0.0
    %246 = vmatmul.mubr.f32.gmra.mxu0 %v124
    %v247 = vpop.f32.mrf.mxu0
    %v248 = vadd.f32 %v105, %v247
    %v249 = vpop.f32.mrf.mxu0
    %250 = vmatprep.mubr.f32.mxu0 0.0
    %251 = vmatmul.mubr.f32.gmra.mxu0 %v127
    %v252 = vpop.f32.mrf.mxu0
    %v253 = vadd.f32 %v105, %v252
    %v254 = vpop.f32.mrf.mxu0
    %255 = vmatprep.mubr.f32.mxu0 0.0
    %256 = vmatmul.mubr.f32.gmra.mxu0 %v130
    %v257 = vpop.f32.mrf.mxu0
    %v258 = vadd.f32 %v105, %v257
    %v259 = vpop.f32.mrf.mxu0
    %260 = vmatprep.mubr.f32.mxu0 0.0
    %261 = vmatmul.mubr.f32.gmra.mxu0 %v133
    %v262 = vpop.f32.mrf.mxu0
    %v263 = vadd.f32 %v105, %v262
    %v264 = vpop.f32.mrf.mxu0
    %265 = vmatprep.mubr.f32.mxu0 0.0
    %266 = vmatmul.mubr.f32.gmra.mxu0 %v136
    %v267 = vpop.f32.mrf.mxu0
    %v268 = vadd.f32 %v105, %v267
    %v269 = vpop.f32.mrf.mxu0
    %270 = vmatprep.mubr.f32.mxu0 0.0
    %271 = vmatmul.mubr.f32.gmra.mxu0 %v139
    %v272 = vpop.f32.mrf.mxu0
    %v273 = vadd.f32 %v105, %v272
    %v274 = vpop.f32.mrf.mxu0
    %275 = vmatprep.mubr.f32.mxu0 0.0
    %276 = vmatmul.mubr.f32.gmra.mxu0 %v142
    %v277 = vpop.f32.mrf.mxu0
    %v278 = vadd.f32 %v105, %v277
    %v279 = vpop.f32.mrf.mxu0
    %280 = vmatprep.mubr.f32.mxu0 0.0
    %281 = vmatmul.mubr.f32.gmra.mxu0 %v145
    %v282 = vpop.f32.mrf.mxu0
    %v283 = vadd.f32 %v105, %v282
    %v284 = vpop.f32.mrf.mxu0
    %285 = vmatprep.mubr.f32.mxu0 0.0
    %286 = vmatmul.mubr.f32.gmra.mxu0 %v148
    %v287 = vpop.f32.mrf.mxu0
    %v288 = vadd.f32 %v105, %v287
    %v289 = vpop.f32.mrf.mxu0
    %290 = vmatprep.mubr.f32.mxu0 0.0
    %291 = vmatmul.mubr.f32.gmra.mxu0 %v151
    %v292 = vpop.f32.mrf.mxu0
    %v293 = vadd.f32 %v105, %v292
    %v294 = vpop.f32.mrf.mxu0
    %295 = vmatprep.mubr.f32.mxu0 0.0
    %296 = vmatmul.mubr.f32.gmra.mxu0 %v154
    %v297 = vpop.f32.mrf.mxu0
    %v298 = vadd.f32 %v105, %v297
    %v299 = vpop.f32.mrf.mxu0
    %300 = vdwg.mxu0
    %v301 = vmax.f32 %v223, 0.0
    %v302 = vmax.f32 %v228, 0.0
    %v303 = vmax.f32 %v233, 0.0
    %v304 = vmax.f32 %v238, 0.0
    %v305 = vmax.f32 %v243, 0.0
    %v306 = vmax.f32 %v248, 0.0
    %v307 = vmax.f32 %v253, 0.0
    %v308 = vmax.f32 %v258, 0.0
    %v309 = vmax.f32 %v263, 0.0
    %v310 = vmax.f32 %v268, 0.0
    %v311 = vmax.f32 %v273, 0.0
    %v312 = vmax.f32 %v278, 0.0
    %v313 = vmax.f32 %v283, 0.0
    %v314 = vmax.f32 %v288, 0.0
    %v315 = vmax.f32 %v293, 0.0
    %v316 = vmax.f32 %v298, 0.0
    %v317 = vld [vmem:[%s3] sm:$0xff]
    %v318 = vld [vmem:[%s3 + $0x8] sm:$0xff]
    %v319 = vld [vmem:[%s3 + $0x10] sm:$0xff]
    %v320 = vld [vmem:[%s3 + $0x18] sm:$0xff]
    %v321 = vld [vmem:[%s3 + $0x20] sm:$0xff]
    %v322 = vld [vmem:[%s3 + $0x28] sm:$0xff]
    %v323 = vld [vmem:[%s3 + $0x30] sm:$0xff]
    %v324 = vld [vmem:[%s3 + $0x38] sm:$0xff]
    %v325 = vld [vmem:[%s3 + $0x40] sm:$0xff]
    %v326 = vld [vmem:[%s3 + $0x48] sm:$0xff]
    %v327 = vld [vmem:[%s3 + $0x50] sm:$0xff]
    %v328 = vld [vmem:[%s3 + $0x58] sm:$0xff]
    %v329 = vld [vmem:[%s3 + $0x60] sm:$0xff]
    %v330 = vld [vmem:[%s3 + $0x68] sm:$0xff]
    %v331 = vld [vmem:[%s3 + $0x70] sm:$0xff]
    %v332 = vld [vmem:[%s3 + $0x78] sm:$0xff]
    %v333 = vld [vmem:[%s4] sm:$0x1]
    %v335 = vlaneseq
    %v336 = vshrl.u32 %v335, 7
    %v337 = vsub.s32 0, %v336
    %v338 = vrot.slane %v333, %v337
    %340 = vmatprep.subr.mxu0 0.0
    %341 = vmatpush1.msra.mxu0 %v332
    %342 = vmatprep.subr.mxu0 0.0
    %343 = vmatpush1.msra.mxu0 %v331
    %344 = vmatprep.subr.mxu0 0.0
    %345 = vmatpush1.msra.mxu0 %v330
    %346 = vmatprep.subr.mxu0 0.0
    %347 = vmatpush1.msra.mxu0 %v329
    %348 = vmatprep.subr.mxu0 0.0
    %349 = vmatpush1.msra.mxu0 %v328
    %350 = vmatprep.subr.mxu0 0.0
    %351 = vmatpush1.msra.mxu0 %v327
    %352 = vmatprep.subr.mxu0 0.0
    %353 = vmatpush1.msra.mxu0 %v326
    %354 = vmatprep.subr.mxu0 0.0
    %355 = vmatpush1.msra.mxu0 %v325
    %356 = vmatprep.subr.mxu0 0.0
    %357 = vmatpush1.msra.mxu0 %v324
    %358 = vmatprep.subr.mxu0 0.0
    %359 = vmatpush1.msra.mxu0 %v323
    %360 = vmatprep.subr.mxu0 0.0
    %361 = vmatpush1.msra.mxu0 %v322
    %362 = vmatprep.subr.mxu0 0.0
    %363 = vmatpush1.msra.mxu0 %v321
    %364 = vmatprep.subr.mxu0 0.0
    %365 = vmatpush1.msra.mxu0 %v320
    %366 = vmatprep.subr.mxu0 0.0
    %367 = vmatpush1.msra.mxu0 %v319
    %368 = vmatprep.subr.mxu0 0.0
    %369 = vmatpush1.msra.mxu0 %v318
    %370 = vmatprep.subr.mxu0 0.0
    %371 = vmatpush1.msra.mxu0 %v317
    %372 = vmatprep.subr.mxu0 0.0
    %373 = vmatpush2.msra.mxu0 0.0
    %374 = vmatprep.subr.mxu0 0.0
    %375 = vmatpush2.msra.mxu0 0.0
    %376 = vmatprep.subr.mxu0 0.0
    %377 = vmatpush2.msra.mxu0 0.0
    %378 = vmatprep.subr.mxu0 0.0
    %379 = vmatpush2.msra.mxu0 0.0
    %380 = vmatprep.subr.mxu0 0.0
    %381 = vmatpush2.msra.mxu0 0.0
    %382 = vmatprep.subr.mxu0 0.0
    %383 = vmatpush2.msra.mxu0 0.0
    %384 = vmatprep.subr.mxu0 0.0
    %385 = vmatpush2.msra.mxu0 0.0
    %386 = vmatprep.subr.mxu0 0.0
    %387 = vmatpush2.msra.mxu0 0.0
    %388 = vmatprep.subr.mxu0 0.0
    %389 = vmatpush2.msra.mxu0 0.0
    %390 = vmatprep.subr.mxu0 0.0
    %391 = vmatpush2.msra.mxu0 0.0
    %392 = vmatprep.subr.mxu0 0.0
    %393 = vmatpush2.msra.mxu0 0.0
    %394 = vmatprep.subr.mxu0 0.0
    %395 = vmatpush2.msra.mxu0 0.0
    %396 = vmatprep.subr.mxu0 0.0
    %397 = vmatpush2.msra.mxu0 0.0
    %398 = vmatprep.subr.mxu0 0.0
    %399 = vmatpush2.msra.mxu0 0.0
    %400 = vmatprep.subr.mxu0 0.0
    %401 = vmatpush2.msra.mxu0 0.0
    %402 = vmatprep.subr.mxu0 0.0
    %403 = vmatpush2.msra.mxu0 0.0
    %404 = vmatprep.mubr.f32.mxu0 0.0
    %405 = vmatmul.mubr.f32.gmra.mxu0 %v301
    %v406 = vpop.f32.mrf.mxu0
    %v407 = vadd.f32 %v338, %v406
    %v408 = vpop.f32.mrf.mxu0
    %409 = vmatprep.mubr.f32.mxu0 0.0
    %410 = vmatmul.mubr.f32.gmra.mxu0 %v302
    %v411 = vpop.f32.mrf.mxu0
    %v412 = vadd.f32 %v338, %v411
    %v413 = vpop.f32.mrf.mxu0
    %414 = vmatprep.mubr.f32.mxu0 0.0
    %415 = vmatmul.mubr.f32.gmra.mxu0 %v303
    %v416 = vpop.f32.mrf.mxu0
    %v417 = vadd.f32 %v338, %v416
    %v418 = vpop.f32.mrf.mxu0
    %419 = vmatprep.mubr.f32.mxu0 0.0
    %420 = vmatmul.mubr.f32.gmra.mxu0 %v304
    %v421 = vpop.f32.mrf.mxu0
    %v422 = vadd.f32 %v338, %v421
    %v423 = vpop.f32.mrf.mxu0
    %424 = vmatprep.mubr.f32.mxu0 0.0
    %425 = vmatmul.mubr.f32.gmra.mxu0 %v305
    %v426 = vpop.f32.mrf.mxu0
    %v427 = vadd.f32 %v338, %v426
    %v428 = vpop.f32.mrf.mxu0
    %429 = vmatprep.mubr.f32.mxu0 0.0
    %430 = vmatmul.mubr.f32.gmra.mxu0 %v306
    %v431 = vpop.f32.mrf.mxu0
    %v432 = vadd.f32 %v338, %v431
    %v433 = vpop.f32.mrf.mxu0
    %434 = vmatprep.mubr.f32.mxu0 0.0
    %435 = vmatmul.mubr.f32.gmra.mxu0 %v307
    %v436 = vpop.f32.mrf.mxu0
    %v437 = vadd.f32 %v338, %v436
    %v438 = vpop.f32.mrf.mxu0
    %439 = vmatprep.mubr.f32.mxu0 0.0
    %440 = vmatmul.mubr.f32.gmra.mxu0 %v308
    %v441 = vpop.f32.mrf.mxu0
    %v442 = vadd.f32 %v338, %v441
    %v443 = vpop.f32.mrf.mxu0
    %444 = vmatprep.mubr.f32.mxu0 0.0
    %445 = vmatmul.mubr.f32.gmra.mxu0 %v309
    %v446 = vpop.f32.mrf.mxu0
    %v447 = vadd.f32 %v338, %v446
    %v448 = vpop.f32.mrf.mxu0
    %449 = vmatprep.mubr.f32.mxu0 0.0
    %450 = vmatmul.mubr.f32.gmra.mxu0 %v310
    %v451 = vpop.f32.mrf.mxu0
    %v452 = vadd.f32 %v338, %v451
    %v453 = vpop.f32.mrf.mxu0
    %454 = vmatprep.mubr.f32.mxu0 0.0
    %455 = vmatmul.mubr.f32.gmra.mxu0 %v311
    %v456 = vpop.f32.mrf.mxu0
    %v457 = vadd.f32 %v338, %v456
    %v458 = vpop.f32.mrf.mxu0
    %459 = vmatprep.mubr.f32.mxu0 0.0
    %460 = vmatmul.mubr.f32.gmra.mxu0 %v312
    %v461 = vpop.f32.mrf.mxu0
    %v462 = vadd.f32 %v338, %v461
    %v463 = vpop.f32.mrf.mxu0
    %464 = vmatprep.mubr.f32.mxu0 0.0
    %465 = vmatmul.mubr.f32.gmra.mxu0 %v313
    %v466 = vpop.f32.mrf.mxu0
    %v467 = vadd.f32 %v338, %v466
    %v468 = vpop.f32.mrf.mxu0
    %469 = vmatprep.mubr.f32.mxu0 0.0
    %470 = vmatmul.mubr.f32.gmra.mxu0 %v314
    %v471 = vpop.f32.mrf.mxu0
    %v472 = vadd.f32 %v338, %v471
    %v473 = vpop.f32.mrf.mxu0
    %474 = vmatprep.mubr.f32.mxu0 0.0
    %475 = vmatmul.mubr.f32.gmra.mxu0 %v315
    %v476 = vpop.f32.mrf.mxu0
    %v477 = vadd.f32 %v338, %v476
    %v478 = vpop.f32.mrf.mxu0
    %479 = vmatprep.mubr.f32.mxu0 0.0
    %480 = vmatmul.mubr.f32.gmra.mxu0 %v316
    %v481 = vpop.f32.mrf.mxu0
    %v482 = vadd.f32 %v338, %v481
    %v483 = vpop.f32.mrf.mxu0
    %484 = vdwg.mxu0
    %v485 = vmax.f32 %v407, 0.0
    %v486 = vmax.f32 %v412, 0.0
    %v487 = vmax.f32 %v417, 0.0
    %v488 = vmax.f32 %v422, 0.0
    %v489 = vmax.f32 %v427, 0.0
    %v490 = vmax.f32 %v432, 0.0
    %v491 = vmax.f32 %v437, 0.0
    %v492 = vmax.f32 %v442, 0.0
    %v493 = vmax.f32 %v447, 0.0
    %v494 = vmax.f32 %v452, 0.0
    %v495 = vmax.f32 %v457, 0.0
    %v496 = vmax.f32 %v462, 0.0
    %v497 = vmax.f32 %v467, 0.0
    %v498 = vmax.f32 %v472, 0.0
    %v499 = vmax.f32 %v477, 0.0
    %v500 = vmax.f32 %v482, 0.0
    %v501 = vld [vmem:[#allocation5] sm:$0xff]
    %v502 = vld [vmem:[#allocation5 + $0x8] sm:$0xff]
    %v503 = vld [vmem:[#allocation5 + $0x10] sm:$0xff]
    %v504 = vld [vmem:[#allocation5 + $0x18] sm:$0xff]
    %v505 = vld [vmem:[#allocation5 + $0x20] sm:$0xff]
    %v506 = vld [vmem:[#allocation5 + $0x28] sm:$0xff]
    %v507 = vld [vmem:[#allocation5 + $0x30] sm:$0xff]
    %v508 = vld [vmem:[#allocation5 + $0x38] sm:$0xff]
    %v509 = vld [vmem:[#allocation5 + $0x40] sm:$0xff]
    %v510 = vld [vmem:[#allocation5 + $0x48] sm:$0xff]
    %v511 = vld [vmem:[#allocation5 + $0x50] sm:$0xff]
    %v512 = vld [vmem:[#allocation5 + $0x58] sm:$0xff]
    %v513 = vld [vmem:[#allocation5 + $0x60] sm:$0xff]
    %v514 = vld [vmem:[#allocation5 + $0x68] sm:$0xff]
    %v515 = vld [vmem:[#allocation5 + $0x70] sm:$0xff]
    %v516 = vld [vmem:[#allocation5 + $0x78] sm:$0xff]
    %v517 = vld [vmem:[%s6] sm:$0x1]
    %v519 = vlaneseq
    %v520 = vshrl.u32 %v519, 7
    %v521 = vsub.s32 0, %v520
    %v522 = vrot.slane %v517, %v521
    %524 = vmatprep.subr.mxu0 0.0
    %525 = vmatpush1.msra.mxu0 %v516
    %526 = vmatprep.subr.mxu0 0.0
    %527 = vmatpush1.msra.mxu0 %v515
    %528 = vmatprep.subr.mxu0 0.0
    %529 = vmatpush1.msra.mxu0 %v514
    %530 = vmatprep.subr.mxu0 0.0
    %531 = vmatpush1.msra.mxu0 %v513
    %532 = vmatprep.subr.mxu0 0.0
    %533 = vmatpush1.msra.mxu0 %v512
    %534 = vmatprep.subr.mxu0 0.0
    %535 = vmatpush1.msra.mxu0 %v511
    %536 = vmatprep.subr.mxu0 0.0
    %537 = vmatpush1.msra.mxu0 %v510
    %538 = vmatprep.subr.mxu0 0.0
    %539 = vmatpush1.msra.mxu0 %v509
    %540 = vmatprep.subr.mxu0 0.0
    %541 = vmatpush1.msra.mxu0 %v508
    %542 = vmatprep.subr.mxu0 0.0
    %543 = vmatpush1.msra.mxu0 %v507
    %544 = vmatprep.subr.mxu0 0.0
    %545 = vmatpush1.msra.mxu0 %v506
    %546 = vmatprep.subr.mxu0 0.0
    %547 = vmatpush1.msra.mxu0 %v505
    %548 = vmatprep.subr.mxu0 0.0
    %549 = vmatpush1.msra.mxu0 %v504
    %550 = vmatprep.subr.mxu0 0.0
    %551 = vmatpush1.msra.mxu0 %v503
    %552 = vmatprep.subr.mxu0 0.0
    %553 = vmatpush1.msra.mxu0 %v502
    %554 = vmatprep.subr.mxu0 0.0
    %555 = vmatpush1.msra.mxu0 %v501
    %556 = vmatprep.subr.mxu0 0.0
    %557 = vmatpush2.msra.mxu0 0.0
    %558 = vmatprep.subr.mxu0 0.0
    %559 = vmatpush2.msra.mxu0 0.0
    %560 = vmatprep.subr.mxu0 0.0
    %561 = vmatpush2.msra.mxu0 0.0
    %562 = vmatprep.subr.mxu0 0.0
    %563 = vmatpush2.msra.mxu0 0.0
    %564 = vmatprep.subr.mxu0 0.0
    %565 = vmatpush2.msra.mxu0 0.0
    %566 = vmatprep.subr.mxu0 0.0
    %567 = vmatpush2.msra.mxu0 0.0
    %568 = vmatprep.subr.mxu0 0.0
    %569 = vmatpush2.msra.mxu0 0.0
    %570 = vmatprep.subr.mxu0 0.0
    %571 = vmatpush2.msra.mxu0 0.0
    %572 = vmatprep.subr.mxu0 0.0
    %573 = vmatpush2.msra.mxu0 0.0
    %574 = vmatprep.subr.mxu0 0.0
    %575 = vmatpush2.msra.mxu0 0.0
    %576 = vmatprep.subr.mxu0 0.0
    %577 = vmatpush2.msra.mxu0 0.0
    %578 = vmatprep.subr.mxu0 0.0
    %579 = vmatpush2.msra.mxu0 0.0
    %580 = vmatprep.subr.mxu0 0.0
    %581 = vmatpush2.msra.mxu0 0.0
    %582 = vmatprep.subr.mxu0 0.0
    %583 = vmatpush2.msra.mxu0 0.0
    %584 = vmatprep.subr.mxu0 0.0
    %585 = vmatpush2.msra.mxu0 0.0
    %586 = vmatprep.subr.mxu0 0.0
    %587 = vmatpush2.msra.mxu0 0.0
    %588 = vmatprep.mubr.f32.mxu0 0.0
    %589 = vmatmul.mubr.f32.gmra.mxu0 %v485
    %v590 = vpop.f32.mrf.mxu0
    %v591 = vadd.f32 %v522, %v590
    %v592 = vpop.f32.mrf.mxu0
    %593 = vmatprep.mubr.f32.mxu0 0.0
    %594 = vmatmul.mubr.f32.gmra.mxu0 %v486
    %v595 = vpop.f32.mrf.mxu0
    %v596 = vadd.f32 %v522, %v595
    %v597 = vpop.f32.mrf.mxu0
    %598 = vmatprep.mubr.f32.mxu0 0.0
    %599 = vmatmul.mubr.f32.gmra.mxu0 %v487
    %v600 = vpop.f32.mrf.mxu0
    %v601 = vadd.f32 %v522, %v600
    %v602 = vpop.f32.mrf.mxu0
    %603 = vmatprep.mubr.f32.mxu0 0.0
    %604 = vmatmul.mubr.f32.gmra.mxu0 %v488
    %v605 = vpop.f32.mrf.mxu0
    %v606 = vadd.f32 %v522, %v605
    %v607 = vpop.f32.mrf.mxu0
    %608 = vmatprep.mubr.f32.mxu0 0.0
    %609 = vmatmul.mubr.f32.gmra.mxu0 %v489
    %v610 = vpop.f32.mrf.mxu0
    %v611 = vadd.f32 %v522, %v610
    %v612 = vpop.f32.mrf.mxu0
    %613 = vmatprep.mubr.f32.mxu0 0.0
    %614 = vmatmul.mubr.f32.gmra.mxu0 %v490
    %v615 = vpop.f32.mrf.mxu0
    %v616 = vadd.f32 %v522, %v615
    %v617 = vpop.f32.mrf.mxu0
    %618 = vmatprep.mubr.f32.mxu0 0.0
    %619 = vmatmul.mubr.f32.gmra.mxu0 %v491
    %v620 = vpop.f32.mrf.mxu0
    %v621 = vadd.f32 %v522, %v620
    %v622 = vpop.f32.mrf.mxu0
    %623 = vmatprep.mubr.f32.mxu0 0.0
    %624 = vmatmul.mubr.f32.gmra.mxu0 %v492
    %v625 = vpop.f32.mrf.mxu0
    %v626 = vadd.f32 %v522, %v625
    %v627 = vpop.f32.mrf.mxu0
    %628 = vmatprep.mubr.f32.mxu0 0.0
    %629 = vmatmul.mubr.f32.gmra.mxu0 %v493
    %v630 = vpop.f32.mrf.mxu0
    %v631 = vadd.f32 %v522, %v630
    %v632 = vpop.f32.mrf.mxu0
    %633 = vmatprep.mubr.f32.mxu0 0.0
    %634 = vmatmul.mubr.f32.gmra.mxu0 %v494
    %v635 = vpop.f32.mrf.mxu0
    %v636 = vadd.f32 %v522, %v635
    %v637 = vpop.f32.mrf.mxu0
    %638 = vmatprep.mubr.f32.mxu0 0.0
    %639 = vmatmul.mubr.f32.gmra.mxu0 %v495
    %v640 = vpop.f32.mrf.mxu0
    %v641 = vadd.f32 %v522, %v640
    %v642 = vpop.f32.mrf.mxu0
    %643 = vmatprep.mubr.f32.mxu0 0.0
    %644 = vmatmul.mubr.f32.gmra.mxu0 %v496
    %v645 = vpop.f32.mrf.mxu0
    %v646 = vadd.f32 %v522, %v645
    %v647 = vpop.f32.mrf.mxu0
    %648 = vmatprep.mubr.f32.mxu0 0.0
    %649 = vmatmul.mubr.f32.gmra.mxu0 %v497
    %v650 = vpop.f32.mrf.mxu0
    %v651 = vadd.f32 %v522, %v650
    %v652 = vpop.f32.mrf.mxu0
    %653 = vmatprep.mubr.f32.mxu0 0.0
    %654 = vmatmul.mubr.f32.gmra.mxu0 %v498
    %v655 = vpop.f32.mrf.mxu0
    %v656 = vadd.f32 %v522, %v655
    %v657 = vpop.f32.mrf.mxu0
    %658 = vmatprep.mubr.f32.mxu0 0.0
    %659 = vmatmul.mubr.f32.gmra.mxu0 %v499
    %v660 = vpop.f32.mrf.mxu0
    %v661 = vadd.f32 %v522, %v660
    %v662 = vpop.f32.mrf.mxu0
    %663 = vmatprep.mubr.f32.mxu0 0.0
    %664 = vmatmul.mubr.f32.gmra.mxu0 %v500
    %v665 = vpop.f32.mrf.mxu0
    %v666 = vadd.f32 %v522, %v665
    %v667 = vpop.f32.mrf.mxu0
    %668 = vdwg.mxu0
    %v669 = vmax.f32 %v591, 0.0
    %v670 = vmax.f32 %v596, 0.0
    %v671 = vmax.f32 %v601, 0.0
    %v672 = vmax.f32 %v606, 0.0
    %v673 = vmax.f32 %v611, 0.0
    %v674 = vmax.f32 %v616, 0.0
    %v675 = vmax.f32 %v621, 0.0
    %v676 = vmax.f32 %v626, 0.0
    %v677 = vmax.f32 %v631, 0.0
    %v678 = vmax.f32 %v636, 0.0
    %v679 = vmax.f32 %v641, 0.0
    %v680 = vmax.f32 %v646, 0.0
    %v681 = vmax.f32 %v651, 0.0
    %v682 = vmax.f32 %v656, 0.0
    %v683 = vmax.f32 %v661, 0.0
    %v684 = vmax.f32 %v666, 0.0
    %v685 = vld [vmem:[#allocation7] sm:$0xff]
    %v686 = vld [vmem:[#allocation7 + $0x8] sm:$0xff]
    %v687 = vld [vmem:[#allocation7 + $0x10] sm:$0xff]
    %v688 = vld [vmem:[#allocation7 + $0x18] sm:$0xff]
    %v689 = vld [vmem:[#allocation7 + $0x20] sm:$0xff]
    %v690 = vld [vmem:[#allocation7 + $0x28] sm:$0xff]
    %v691 = vld [vmem:[#allocation7 + $0x30] sm:$0xff]
    %v692 = vld [vmem:[#allocation7 + $0x38] sm:$0xff]
    %v693 = vld [vmem:[#allocation7 + $0x40] sm:$0xff]
    %v694 = vld [vmem:[#allocation7 + $0x48] sm:$0xff]
    %v695 = vld [vmem:[#allocation7 + $0x50] sm:$0xff]
    %v696 = vld [vmem:[#allocation7 + $0x58] sm:$0xff]
    %v697 = vld [vmem:[#allocation7 + $0x60] sm:$0xff]
    %v698 = vld [vmem:[#allocation7 + $0x68] sm:$0xff]
    %v699 = vld [vmem:[#allocation7 + $0x70] sm:$0xff]
    %v700 = vld [vmem:[#allocation7 + $0x78] sm:$0xff]
    %v701 = vld [vmem:[%s8] sm:$0x1]
    %v703 = vlaneseq
    %v704 = vshrl.u32 %v703, 7
    %v705 = vsub.s32 0, %v704
    %v706 = vrot.slane %v701, %v705
    %708 = vmatprep.subr.mxu0 0.0
    %709 = vmatpush1.msra.mxu0 %v700
    %710 = vmatprep.subr.mxu0 0.0
    %711 = vmatpush1.msra.mxu0 %v699
    %712 = vmatprep.subr.mxu0 0.0
    %713 = vmatpush1.msra.mxu0 %v698
    %714 = vmatprep.subr.mxu0 0.0
    %715 = vmatpush1.msra.mxu0 %v697
    %716 = vmatprep.subr.mxu0 0.0
    %717 = vmatpush1.msra.mxu0 %v696
    %718 = vmatprep.subr.mxu0 0.0
    %719 = vmatpush1.msra.mxu0 %v695
    %720 = vmatprep.subr.mxu0 0.0
    %721 = vmatpush1.msra.mxu0 %v694
    %722 = vmatprep.subr.mxu0 0.0
    %723 = vmatpush1.msra.mxu0 %v693
    %724 = vmatprep.subr.mxu0 0.0
    %725 = vmatpush1.msra.mxu0 %v692
    %726 = vmatprep.subr.mxu0 0.0
    %727 = vmatpush1.msra.mxu0 %v691
    %728 = vmatprep.subr.mxu0 0.0
    %729 = vmatpush1.msra.mxu0 %v690
    %730 = vmatprep.subr.mxu0 0.0
    %731 = vmatpush1.msra.mxu0 %v689
    %732 = vmatprep.subr.mxu0 0.0
    %733 = vmatpush1.msra.mxu0 %v688
    %734 = vmatprep.subr.mxu0 0.0
    %735 = vmatpush1.msra.mxu0 %v687
    %736 = vmatprep.subr.mxu0 0.0
    %737 = vmatpush1.msra.mxu0 %v686
    %738 = vmatprep.subr.mxu0 0.0
    %739 = vmatpush1.msra.mxu0 %v685
    %740 = vmatprep.subr.mxu0 0.0
    %741 = vmatpush2.msra.mxu0 0.0
    %742 = vmatprep.subr.mxu0 0.0
    %743 = vmatpush2.msra.mxu0 0.0
    %744 = vmatprep.subr.mxu0 0.0
    %745 = vmatpush2.msra.mxu0 0.0
    %746 = vmatprep.subr.mxu0 0.0
    %747 = vmatpush2.msra.mxu0 0.0
    %748 = vmatprep.subr.mxu0 0.0
    %749 = vmatpush2.msra.mxu0 0.0
    %750 = vmatprep.subr.mxu0 0.0
    %751 = vmatpush2.msra.mxu0 0.0
    %752 = vmatprep.subr.mxu0 0.0
    %753 = vmatpush2.msra.mxu0 0.0
    %754 = vmatprep.subr.mxu0 0.0
    %755 = vmatpush2.msra.mxu0 0.0
    %756 = vmatprep.subr.mxu0 0.0
    %757 = vmatpush2.msra.mxu0 0.0
    %758 = vmatprep.subr.mxu0 0.0
    %759 = vmatpush2.msra.mxu0 0.0
    %760 = vmatprep.subr.mxu0 0.0
    %761 = vmatpush2.msra.mxu0 0.0
    %762 = vmatprep.subr.mxu0 0.0
    %763 = vmatpush2.msra.mxu0 0.0
    %764 = vmatprep.subr.mxu0 0.0
    %765 = vmatpush2.msra.mxu0 0.0
    %766 = vmatprep.subr.mxu0 0.0
    %767 = vmatpush2.msra.mxu0 0.0
    %768 = vmatprep.subr.mxu0 0.0
    %769 = vmatpush2.msra.mxu0 0.0
    %770 = vmatprep.subr.mxu0 0.0
    %771 = vmatpush2.msra.mxu0 0.0
    %772 = vmatprep.mubr.f32.mxu0 0.0
    %773 = vmatmul.mubr.f32.gmra.mxu0 %v669
    %v774 = vpop.f32.mrf.mxu0
    %v775 = vadd.f32 %v706, %v774
    %v776 = vpop.f32.mrf.mxu0
    %777 = vmatprep.mubr.f32.mxu0 0.0
    %778 = vmatmul.mubr.f32.gmra.mxu0 %v670
    %v779 = vpop.f32.mrf.mxu0
    %v780 = vadd.f32 %v706, %v779
    %v781 = vpop.f32.mrf.mxu0
    %782 = vmatprep.mubr.f32.mxu0 0.0
    %783 = vmatmul.mubr.f32.gmra.mxu0 %v671
    %v784 = vpop.f32.mrf.mxu0
    %v785 = vadd.f32 %v706, %v784
    %v786 = vpop.f32.mrf.mxu0
    %787 = vmatprep.mubr.f32.mxu0 0.0
    %788 = vmatmul.mubr.f32.gmra.mxu0 %v672
    %v789 = vpop.f32.mrf.mxu0
    %v790 = vadd.f32 %v706, %v789
    %v791 = vpop.f32.mrf.mxu0
    %792 = vmatprep.mubr.f32.mxu0 0.0
    %793 = vmatmul.mubr.f32.gmra.mxu0 %v673
    %v794 = vpop.f32.mrf.mxu0
    %v795 = vadd.f32 %v706, %v794
    %v796 = vpop.f32.mrf.mxu0
    %797 = vmatprep.mubr.f32.mxu0 0.0
    %798 = vmatmul.mubr.f32.gmra.mxu0 %v674
    %v799 = vpop.f32.mrf.mxu0
    %v800 = vadd.f32 %v706, %v799
    %v801 = vpop.f32.mrf.mxu0
    %802 = vmatprep.mubr.f32.mxu0 0.0
    %803 = vmatmul.mubr.f32.gmra.mxu0 %v675
    %v804 = vpop.f32.mrf.mxu0
    %v805 = vadd.f32 %v706, %v804
    %v806 = vpop.f32.mrf.mxu0
    %807 = vmatprep.mubr.f32.mxu0 0.0
    %808 = vmatmul.mubr.f32.gmra.mxu0 %v676
    %v809 = vpop.f32.mrf.mxu0
    %v810 = vadd.f32 %v706, %v809
    %v811 = vpop.f32.mrf.mxu0
    %812 = vmatprep.mubr.f32.mxu0 0.0
    %813 = vmatmul.mubr.f32.gmra.mxu0 %v677
    %v814 = vpop.f32.mrf.mxu0
    %v815 = vadd.f32 %v706, %v814
    %v816 = vpop.f32.mrf.mxu0
    %817 = vmatprep.mubr.f32.mxu0 0.0
    %818 = vmatmul.mubr.f32.gmra.mxu0 %v678
    %v819 = vpop.f32.mrf.mxu0
    %v820 = vadd.f32 %v706, %v819
    %v821 = vpop.f32.mrf.mxu0
    %822 = vmatprep.mubr.f32.mxu0 0.0
    %823 = vmatmul.mubr.f32.gmra.mxu0 %v679
    %v824 = vpop.f32.mrf.mxu0
    %v825 = vadd.f32 %v706, %v824
    %v826 = vpop.f32.mrf.mxu0
    %827 = vmatprep.mubr.f32.mxu0 0.0
    %828 = vmatmul.mubr.f32.gmra.mxu0 %v680
    %v829 = vpop.f32.mrf.mxu0
    %v830 = vadd.f32 %v706, %v829
    %v831 = vpop.f32.mrf.mxu0
    %832 = vmatprep.mubr.f32.mxu0 0.0
    %833 = vmatmul.mubr.f32.gmra.mxu0 %v681
    %v834 = vpop.f32.mrf.mxu0
    %v835 = vadd.f32 %v706, %v834
    %v836 = vpop.f32.mrf.mxu0
    %837 = vmatprep.mubr.f32.mxu0 0.0
    %838 = vmatmul.mubr.f32.gmra.mxu0 %v682
    %v839 = vpop.f32.mrf.mxu0
    %v840 = vadd.f32 %v706, %v839
    %v841 = vpop.f32.mrf.mxu0
    %842 = vmatprep.mubr.f32.mxu0 0.0
    %843 = vmatmul.mubr.f32.gmra.mxu0 %v683
    %v844 = vpop.f32.mrf.mxu0
    %v845 = vadd.f32 %v706, %v844
    %v846 = vpop.f32.mrf.mxu0
    %847 = vmatprep.mubr.f32.mxu0 0.0
    %848 = vmatmul.mubr.f32.gmra.mxu0 %v684
    %v849 = vpop.f32.mrf.mxu0
    %v850 = vadd.f32 %v706, %v849
    %v851 = vpop.f32.mrf.mxu0
    %852 = vdwg.mxu0
    %v853 = vmax.f32 %v775, 0.0
    %v854 = vmax.f32 %v780, 0.0
    %v855 = vmax.f32 %v785, 0.0
    %v856 = vmax.f32 %v790, 0.0
    %v857 = vmax.f32 %v795, 0.0
    %v858 = vmax.f32 %v800, 0.0
    %v859 = vmax.f32 %v805, 0.0
    %v860 = vmax.f32 %v810, 0.0
    %v861 = vmax.f32 %v815, 0.0
    %v862 = vmax.f32 %v820, 0.0
    %v863 = vmax.f32 %v825, 0.0
    %v864 = vmax.f32 %v830, 0.0
    %v865 = vmax.f32 %v835, 0.0
    %v866 = vmax.f32 %v840, 0.0
    %v867 = vmax.f32 %v845, 0.0
    %v868 = vmax.f32 %v850, 0.0
    %v869 = vld [vmem:[%s9] sm:$0x1]
    %s870 = sld [smem:[#allocation2]]
    %v871 = vstv %s870
    %872 = vmatprep.subr.mxu0 0.0
    %873 = vmatpush1.xpose.msra.mxu0 %v868
    %874 = vmatprep.subr.mxu0 0.0
    %875 = vmatpush1.xpose.msra.mxu0 %v867
    %876 = vmatprep.subr.mxu0 0.0
    %877 = vmatpush1.xpose.msra.mxu0 %v866
    %878 = vmatprep.subr.mxu0 0.0
    %879 = vmatpush1.xpose.msra.mxu0 %v865
    %880 = vmatprep.subr.mxu0 0.0
    %881 = vmatpush1.xpose.msra.mxu0 %v864
    %882 = vmatprep.subr.mxu0 0.0
    %883 = vmatpush1.xpose.msra.mxu0 %v863
    %884 = vmatprep.subr.mxu0 0.0
    %885 = vmatpush1.xpose.msra.mxu0 %v862
    %886 = vmatprep.subr.mxu0 0.0
    %887 = vmatpush1.xpose.msra.mxu0 %v861
    %888 = vmatprep.subr.mxu0 0.0
    %889 = vmatpush1.xpose.msra.mxu0 %v860
    %890 = vmatprep.subr.mxu0 0.0
    %891 = vmatpush1.xpose.msra.mxu0 %v859
    %892 = vmatprep.subr.mxu0 0.0
    %893 = vmatpush1.xpose.msra.mxu0 %v858
    %894 = vmatprep.subr.mxu0 0.0
    %895 = vmatpush1.xpose.msra.mxu0 %v857
    %896 = vmatprep.subr.mxu0 0.0
    %897 = vmatpush1.xpose.msra.mxu0 %v856
    %898 = vmatprep.subr.mxu0 0.0
    %899 = vmatpush1.xpose.msra.mxu0 %v855
    %900 = vmatprep.subr.mxu0 0.0
    %901 = vmatpush1.xpose.msra.mxu0 %v854
    %902 = vmatprep.subr.mxu0 0.0
    %903 = vmatpush1.xpose.msra.mxu0 %v853
    %904 = vmatprep.subr.mxu0 0.0
    %905 = vmatpush2.xpose.msra.mxu0 0.0
    %906 = vmatprep.subr.mxu0 0.0
    %907 = vmatpush2.xpose.msra.mxu0 0.0
    %908 = vmatprep.subr.mxu0 0.0
    %909 = vmatpush2.xpose.msra.mxu0 0.0
    %910 = vmatprep.subr.mxu0 0.0
    %911 = vmatpush2.xpose.msra.mxu0 0.0
    %912 = vmatprep.subr.mxu0 0.0
    %913 = vmatpush2.xpose.msra.mxu0 0.0
    %914 = vmatprep.subr.mxu0 0.0
    %915 = vmatpush2.xpose.msra.mxu0 0.0
    %916 = vmatprep.subr.mxu0 0.0
    %917 = vmatpush2.xpose.msra.mxu0 0.0
    %918 = vmatprep.subr.mxu0 0.0
    %919 = vmatpush2.xpose.msra.mxu0 0.0
    %920 = vmatprep.subr.mxu0 0.0
    %921 = vmatpush2.xpose.msra.mxu0 0.0
    %922 = vmatprep.subr.mxu0 0.0
    %923 = vmatpush2.xpose.msra.mxu0 0.0
    %924 = vmatprep.subr.mxu0 0.0
    %925 = vmatpush2.xpose.msra.mxu0 0.0
    %926 = vmatprep.subr.mxu0 0.0
    %927 = vmatpush2.xpose.msra.mxu0 0.0
    %928 = vmatprep.subr.mxu0 0.0
    %929 = vmatpush2.xpose.msra.mxu0 0.0
    %930 = vmatprep.subr.mxu0 0.0
    %931 = vmatpush2.xpose.msra.mxu0 0.0
    %932 = vmatprep.subr.mxu0 0.0
    %933 = vmatpush2.xpose.msra.mxu0 0.0
    %934 = vmatprep.subr.mxu0 0.0
    %935 = vmatpush2.xpose.msra.mxu0 0.0
    %936 = vmatprep.mubr.f32.mxu0 0.0
    %937 = vmatmul.mubr.f32.gmra.mxu0 %v869
    %v938 = vpop.f32.mrf.mxu0
    %v939 = vadd.f32 %v871, %v938
    %v940 = vpop.f32.mrf.mxu0
    %941 = vdwg.mxu0
    %v942 = vxor.u32 %v939, 2147483648
    %v943 = vmul.f32 %v942, 1.442695
    %v944 = vpow.pop %v943
    %v945 = vadd.f32 %v944, 1.0
    %v946 = vrcp.pop %v945
    %v947 = vmul.f32 1.0, %v946
    %948 = vst [vmem:[%s11] sm:$0x1] %v947
    // Predicated region
    $region58: #{dnn0_forward.1} parent=1 // pred_check
      _
    $region59: #{dnn0_forward.1} parent=1 // pred_check_branch
      %950 = sbr.rel (0) target = $region61
    $region60: #{dnn0_forward.1} parent=1 // pred_region
      _
    $region61: #{dnn0_forward.1} parent=1 // pred_fallthru
      _
    // Predicated region
    $region62: #{dnn0_forward.1} parent=1 // pred_check
      _
    $region63: #{dnn0_forward.1} parent=1 // pred_check_branch
      %952 = sbr.rel (0) target = $region65
    $region64: #{dnn0_forward.1} parent=1 // pred_region
      _
    $region65: #{dnn0_forward.1} parent=1 // pred_fallthru
      _
    %953 = vsyncpa [#allocation4], 1
    %954 = vsyncpa [#allocation6], 1

</llo_original>
